<compile_context>
chip_gen: v7x
topology: tpu7x:2x2x1
jax: 0.10.0
libtpu: 0.0.40
codegen_flags: <defaults>
</compile_context>

<pallas_src>
import functools

import jax
import jax.numpy as jnp
from jax.experimental import pallas as pl
from jax.experimental.pallas import tpu as pltpu


def _dwconv3x3_kernel(x_ref, w_ref, b_ref, o_ref, xp_ref, *, H, W, pad):
    # x_ref : (1, CT, L)   input block: channels (replicated to C*M rows) on
    #                      sublanes, flattened spatial L = H*W on lanes.
    # w_ref : (CT, 9)      per-output-channel 3x3 taps, tap index = kh*3 + kw.
    # b_ref : (CT, 1)      bias column.
    # o_ref : (1, CT, L)   output block (lane-dense when L % 128 == 0).
    # xp_ref: (CT, L+2*pad) VMEM scratch: zero halo | image | zero halo.
    CT = x_ref.shape[1]
    L = H * W

    # Build the zero-padded flat image in VMEM (no extra HBM pad pass).
    xp_ref[...] = jnp.zeros_like(xp_ref)
    xp_ref[:, pl.ds(pad, L)] = x_ref[0]              # 128-aligned placement
    xp = xp_ref[...]                                 # (CT, L + 2*pad)

    w = w_ref[...].astype(jnp.float32)               # (CT, 9), tiny
    b = b_ref[...].astype(jnp.float32)               # (CT, 1)

    # Column index of every output lane; masks for the two horizontal taps that
    # would otherwise wrap across row boundaries in the flattened layout.
    col = jax.lax.broadcasted_iota(jnp.int32, (CT, L), 1) % W
    not_left = col != 0                              # valid when dw == -1
    not_right = col != (W - 1)                       # valid when dw == +1

    acc = jnp.zeros((CT, L), jnp.float32)
    for kh in range(3):
        for kw in range(3):
            # flat source offset of tap (kh, kw): pad + (kh-1)*W + (kw-1) >= 0
            start = pad + (kh - 1) * W + (kw - 1)
            xs = xp[:, start:start + L].astype(jnp.float32)
            if kw == 0:
                xs = jnp.where(not_left, xs, 0.0)
            elif kw == 2:
                xs = jnp.where(not_right, xs, 0.0)
            # (CT, 1) weight column broadcast along lanes; pure VPU FMA.
            t = kh * 3 + kw
            acc = acc + xs * w[:, t:t + 1]

    o_ref[0] = (acc + b).astype(o_ref.dtype)


def depthwise_conv2d(x_nchw, weight_oihw, bias, kernels_per_layer, *,
                     channel_tile=None):
    """Equivalent of nn.Conv2d(C, C*M, 3, padding=1, groups=C) on NCHW input."""
    N, C, H, W = x_nchw.shape
    M = kernels_per_layer
    CM = C * M
    L = H * W
    assert weight_oihw.shape == (CM, 1, 3, 3)
    assert bias.shape == (CM,)

    # Optional channel-group tiling (second 'parallel' grid axis; also bounds
    # VMEM when C*M is large). Falls back to a single group if not a divisor.
    ct = CM if (channel_tile is None or CM % channel_tile) else channel_tile

    # Free reshape NCHW -> (N, C, H*W); replicate channels to C*M rows so kernel
    # row oc = c*M + m directly produces output channel oc (PyTorch groups=C
    # ordering). For the common depthwise case M == 1 this is a no-op.
    x_flat = x_nchw.reshape(N, C, L)
    if M > 1:
        x_flat = jnp.repeat(x_flat, M, axis=1)       # (N, C*M, L)
    w_taps = weight_oihw.reshape(CM, 9)              # (oc, kh*3 + kw)
    b_col = bias.reshape(CM, 1)

    # In-VMEM halo: image sits at a 128-aligned lane offset inside the scratch,
    # with at least W+1 zero lanes on each side (covers all 3x3 tap offsets).
    pad = ((W + 1 + 127) // 128) * 128
    P = L + 2 * pad

    kernel = functools.partial(_dwconv3x3_kernel, H=H, W=W, pad=pad)
    out_flat = pl.pallas_call(
        kernel,
        out_shape=jax.ShapeDtypeStruct((N, CM, L), x_nchw.dtype),
        grid_spec=pltpu.PrefetchScalarGridSpec(
            num_scalar_prefetch=0,
            grid=(N, CM // ct),
            in_specs=[
                pl.BlockSpec((1, ct, L), lambda n, c: (n, c, 0)),
                pl.BlockSpec((ct, 9), lambda n, c: (c, 0)),
                pl.BlockSpec((ct, 1), lambda n, c: (c, 0)),
            ],
            out_specs=pl.BlockSpec((1, ct, L), lambda n, c: (n, c, 0)),
            scratch_shapes=[pltpu.VMEM((ct, P), x_nchw.dtype)],
        ),
        compiler_params=pltpu.CompilerParams(
            # Both axes are independent -> shard across TensorCores (v7x: 2 TC).
            dimension_semantics=("parallel", "parallel"),
            # Generous scoped-VMEM ceiling; blocks here are tiny. For very large
            # H*W, add a spatial grid axis with a (W+1)-lane halo per tile.
            vmem_limit_bytes=64 * 1024 * 1024,
        ),
    )(x_flat, w_taps, b_col)

    # Free reshape back to the PyTorch output convention (N, C*M, H, W).
    return out_flat.reshape(N, CM, H, W)


if __name__ == "__main__":
    key = jax.random.PRNGKey(0)
    kx, kw, kb = jax.random.split(key, 3)

    # Module config: inplane=4, kernels_per_layer=2 (outplane unused in forward).
    N, C, H, W = 2, 4, 16, 16
    M = 2

    x = jax.random.normal(kx, (N, C, H, W), jnp.float32)
    # PyTorch parameter shapes: (C*M, 1, 3, 3) and (C*M,)
    weight = jax.random.normal(kw, (C * M, 1, 3, 3), jnp.float32) * 0.1
    bias = jax.random.normal(kb, (C * M,), jnp.float32) * 0.1

    out = depthwise_conv2d(x, weight, bias, M)
    out = jax.block_until_ready(out)
    assert out.shape == (N, C * M, H, W)

    # Cross-check against lax grouped conv (same semantics as torch F.conv2d).
    ref = jax.lax.conv_general_dilated(
        x, weight, window_strides=(1, 1), padding=((1, 1), (1, 1)),
        dimension_numbers=("NCHW", "OIHW", "NCHW"), feature_group_count=C,
    ) + bias[None, :, None, None]
    assert jnp.allclose(out, ref, atol=1e-5, rtol=1e-5)

    print("KERNEL_OK")
</pallas_src>

<mosaic_0001>
module attributes {stable_mosaic.version = 11 : i64} {
  func.func @_dwconv3x3_kernel(%arg0: i32, %arg1: i32, %arg2: memref<1x8x256xf32, #tpu.memory_space<vmem>>, %arg3: memref<8x9xf32, #tpu.memory_space<vmem>>, %arg4: memref<8x1xf32, #tpu.memory_space<vmem>>, %arg5: memref<1x8x256xf32, #tpu.memory_space<vmem>>, %arg6: memref<8x512xf32, #tpu.memory_space<vmem>>) attributes {dimension_semantics = [#tpu.dimension_semantics<parallel>, #tpu.dimension_semantics<parallel>], iteration_bounds = array<i64: 2, 1>, scalar_prefetch = 0 : i64, scratch_operands = 1 : i64, tpu.core_type = #tpu.core_type<tc>, window_params = [{transform_indices = @transform_0, window_bounds = array<i64: 1, 8, 256>}, {transform_indices = @transform_1, window_bounds = array<i64: 8, 9>}, {transform_indices = @transform_2, window_bounds = array<i64: 8, 1>}, {transform_indices = @transform_3, window_bounds = array<i64: 1, 8, 256>}]} {
    %cst = arith.constant 0.000000e+00 : f32
    %0 = vector.broadcast %cst : f32 to vector<8x512xf32>
    %c0 = arith.constant 0 : index
    %c0_0 = arith.constant 0 : index
    %1 = vector.load %arg6[%c0, %c0_0] : memref<8x512xf32, #tpu.memory_space<vmem>>, vector<8x512xf32>
    tpu.vector_store %arg6[%c0, %c0_0], %0 {strides = array<i32>} : memref<8x512xf32, #tpu.memory_space<vmem>>, vector<8x512xf32>,
    %c0_1 = arith.constant 0 : index
    %c0_2 = arith.constant 0 : index
    %c0_3 = arith.constant 0 : index
    %2 = vector.load %arg2[%c0_1, %c0_2, %c0_3] : memref<1x8x256xf32, #tpu.memory_space<vmem>>, vector<1x8x256xf32>
    %3 = vector.shape_cast %2 : vector<1x8x256xf32> to vector<8x256xf32>
    %c0_4 = arith.constant 0 : index
    %c128 = arith.constant 128 : index
    %4 = vector.load %arg6[%c0_4, %c128] : memref<8x512xf32, #tpu.memory_space<vmem>>, vector<8x256xf32>
    tpu.vector_store %arg6[%c0_4, %c128], %3 {strides = array<i32>} : memref<8x512xf32, #tpu.memory_space<vmem>>, vector<8x256xf32>,
    %c0_5 = arith.constant 0 : index
    %c0_6 = arith.constant 0 : index
    %5 = vector.load %arg6[%c0_5, %c0_6] : memref<8x512xf32, #tpu.memory_space<vmem>>, vector<8x512xf32>
    %c0_7 = arith.constant 0 : index
    %c0_8 = arith.constant 0 : index
    %6 = vector.load %arg3[%c0_7, %c0_8] : memref<8x9xf32, #tpu.memory_space<vmem>>, vector<8x9xf32>
    %c0_9 = arith.constant 0 : index
    %c0_10 = arith.constant 0 : index
    %7 = vector.load %arg4[%c0_9, %c0_10] : memref<8x1xf32, #tpu.memory_space<vmem>>, vector<8x1xf32>
    %8 = tpu.iota {dimensions = array<i32: 1>} : vector<8x256xi32>
    %c16_i32 = arith.constant 16 : i32
    %c0_i32 = arith.constant 0 : i32
    %9 = arith.cmpi eq, %c16_i32, %c0_i32 : i32
    %c1_i32 = arith.constant 1 : i32
    %10 = arith.select %9, %c1_i32, %c16_i32 : i32
    %11 = vector.broadcast %10 : i32 to vector<8x256xi32>
    %12 = arith.remsi %8, %11 : vector<8x256xi32>
    %c0_i32_11 = arith.constant 0 : i32
    %13 = vector.broadcast %c0_i32_11 : i32 to vector<8x256xi32>
    %14 = arith.cmpi ne, %12, %13 : vector<8x256xi32>
    %c0_i32_12 = arith.constant 0 : i32
    %15 = vector.broadcast %c0_i32_12 : i32 to vector<8x256xi32>
    %16 = arith.cmpi slt, %12, %15 : vector<8x256xi32>
    %c0_i32_13 = arith.constant 0 : i32
    %17 = arith.cmpi slt, %10, %c0_i32_13 : i32
    %18 = vector.broadcast %17 : i1 to vector<8x256xi1>
    %19 = vector.broadcast %18 : vector<8x256xi1> to vector<8x256xi1>
    %20 = arith.xori %16, %19 : vector<8x256xi1>
    %21 = arith.andi %20, %14 : vector<8x256xi1>
    %22 = vector.broadcast %10 : i32 to vector<8x256xi32>
    %23 = arith.addi %12, %22 : vector<8x256xi32>
    %24 = arith.select %21, %23, %12 : vector<8x256xi1>, vector<8x256xi32>
    %c0_i32_14 = arith.constant 0 : i32
    %25 = vector.broadcast %c0_i32_14 : i32 to vector<8x256xi32>
    %26 = arith.cmpi ne, %24, %25 : vector<8x256xi32>
    %c15_i32 = arith.constant 15 : i32
    %27 = vector.broadcast %c15_i32 : i32 to vector<8x256xi32>
    %28 = arith.cmpi ne, %24, %27 : vector<8x256xi32>
    %cst_15 = arith.constant 0.000000e+00 : f32
    %29 = vector.broadcast %cst_15 : f32 to vector<8x256xf32>
    %30 = vector.extract_strided_slice %5 {offsets = [0, 111], sizes = [8, 256], strides = [1, 1]} : vector<8x512xf32> to vector<8x256xf32>
    %cst_16 = arith.constant 0.000000e+00 : f32
    %31 = vector.broadcast %cst_16 : f32 to vector<8x256xf32>
    %32 = arith.select %26, %30, %31 : vector<8x256xi1>, vector<8x256xf32>
    %33 = vector.extract_strided_slice %6 {offsets = [0, 0], sizes = [8, 1], strides = [1, 1]} : vector<8x9xf32> to vector<8x1xf32>
    %34 = vector.broadcast %33 : vector<8x1xf32> to vector<8x256xf32>
    %35 = arith.mulf %32, %34 : vector<8x256xf32>
    %36 = arith.addf %29, %35 : vector<8x256xf32>
    %37 = vector.extract_strided_slice %5 {offsets = [0, 112], sizes = [8, 256], strides = [1, 1]} : vector<8x512xf32> to vector<8x256xf32>
    %38 = vector.extract_strided_slice %6 {offsets = [0, 1], sizes = [8, 1], strides = [1, 1]} : vector<8x9xf32> to vector<8x1xf32>
    %39 = vector.broadcast %38 : vector<8x1xf32> to vector<8x256xf32>
    %40 = arith.mulf %37, %39 : vector<8x256xf32>
    %41 = arith.addf %36, %40 : vector<8x256xf32>
    %42 = vector.extract_strided_slice %5 {offsets = [0, 113], sizes = [8, 256], strides = [1, 1]} : vector<8x512xf32> to vector<8x256xf32>
    %cst_17 = arith.constant 0.000000e+00 : f32
    %43 = vector.broadcast %cst_17 : f32 to vector<8x256xf32>
    %44 = arith.select %28, %42, %43 : vector<8x256xi1>, vector<8x256xf32>
    %45 = vector.extract_strided_slice %6 {offsets = [0, 2], sizes = [8, 1], strides = [1, 1]} : vector<8x9xf32> to vector<8x1xf32>
    %46 = vector.broadcast %45 : vector<8x1xf32> to vector<8x256xf32>
    %47 = arith.mulf %44, %46 : vector<8x256xf32>
    %48 = arith.addf %41, %47 : vector<8x256xf32>
    %49 = vector.extract_strided_slice %5 {offsets = [0, 127], sizes = [8, 256], strides = [1, 1]} : vector<8x512xf32> to vector<8x256xf32>
    %cst_18 = arith.constant 0.000000e+00 : f32
    %50 = vector.broadcast %cst_18 : f32 to vector<8x256xf32>
    %51 = arith.select %26, %49, %50 : vector<8x256xi1>, vector<8x256xf32>
    %52 = vector.extract_strided_slice %6 {offsets = [0, 3], sizes = [8, 1], strides = [1, 1]} : vector<8x9xf32> to vector<8x1xf32>
    %53 = vector.broadcast %52 : vector<8x1xf32> to vector<8x256xf32>
    %54 = arith.mulf %51, %53 : vector<8x256xf32>
    %55 = arith.addf %48, %54 : vector<8x256xf32>
    %56 = vector.extract_strided_slice %5 {offsets = [0, 128], sizes = [8, 256], strides = [1, 1]} : vector<8x512xf32> to vector<8x256xf32>
    %57 = vector.extract_strided_slice %6 {offsets = [0, 4], sizes = [8, 1], strides = [1, 1]} : vector<8x9xf32> to vector<8x1xf32>
    %58 = vector.broadcast %57 : vector<8x1xf32> to vector<8x256xf32>
    %59 = arith.mulf %56, %58 : vector<8x256xf32>
    %60 = arith.addf %55, %59 : vector<8x256xf32>
    %61 = vector.extract_strided_slice %5 {offsets = [0, 129], sizes = [8, 256], strides = [1, 1]} : vector<8x512xf32> to vector<8x256xf32>
    %cst_19 = arith.constant 0.000000e+00 : f32
    %62 = vector.broadcast %cst_19 : f32 to vector<8x256xf32>
    %63 = arith.select %28, %61, %62 : vector<8x256xi1>, vector<8x256xf32>
    %64 = vector.extract_strided_slice %6 {offsets = [0, 5], sizes = [8, 1], strides = [1, 1]} : vector<8x9xf32> to vector<8x1xf32>
    %65 = vector.broadcast %64 : vector<8x1xf32> to vector<8x256xf32>
    %66 = arith.mulf %63, %65 : vector<8x256xf32>
    %67 = arith.addf %60, %66 : vector<8x256xf32>
    %68 = vector.extract_strided_slice %5 {offsets = [0, 143], sizes = [8, 256], strides = [1, 1]} : vector<8x512xf32> to vector<8x256xf32>
    %cst_20 = arith.constant 0.000000e+00 : f32
    %69 = vector.broadcast %cst_20 : f32 to vector<8x256xf32>
    %70 = arith.select %26, %68, %69 : vector<8x256xi1>, vector<8x256xf32>
    %71 = vector.extract_strided_slice %6 {offsets = [0, 6], sizes = [8, 1], strides = [1, 1]} : vector<8x9xf32> to vector<8x1xf32>
    %72 = vector.broadcast %71 : vector<8x1xf32> to vector<8x256xf32>
    %73 = arith.mulf %70, %72 : vector<8x256xf32>
    %74 = arith.addf %67, %73 : vector<8x256xf32>
    %75 = vector.extract_strided_slice %5 {offsets = [0, 144], sizes = [8, 256], strides = [1, 1]} : vector<8x512xf32> to vector<8x256xf32>
    %76 = vector.extract_strided_slice %6 {offsets = [0, 7], sizes = [8, 1], strides = [1, 1]} : vector<8x9xf32> to vector<8x1xf32>
    %77 = vector.broadcast %76 : vector<8x1xf32> to vector<8x256xf32>
    %78 = arith.mulf %75, %77 : vector<8x256xf32>
    %79 = arith.addf %74, %78 : vector<8x256xf32>
    %80 = vector.extract_strided_slice %5 {offsets = [0, 145], sizes = [8, 256], strides = [1, 1]} : vector<8x512xf32> to vector<8x256xf32>
    %cst_21 = arith.constant 0.000000e+00 : f32
    %81 = vector.broadcast %cst_21 : f32 to vector<8x256xf32>
    %82 = arith.select %28, %80, %81 : vector<8x256xi1>, vector<8x256xf32>
    %83 = vector.extract_strided_slice %6 {offsets = [0, 8], sizes = [8, 1], strides = [1, 1]} : vector<8x9xf32> to vector<8x1xf32>
    %84 = vector.broadcast %83 : vector<8x1xf32> to vector<8x256xf32>
    %85 = arith.mulf %82, %84 : vector<8x256xf32>
    %86 = arith.addf %79, %85 : vector<8x256xf32>
    %87 = vector.broadcast %7 : vector<8x1xf32> to vector<8x256xf32>
    %88 = arith.addf %86, %87 : vector<8x256xf32>
    %c0_22 = arith.constant 0 : index
    %c0_23 = arith.constant 0 : index
    %c0_24 = arith.constant 0 : index
    %89 = vector.load %arg5[%c0_22, %c0_23, %c0_24] : memref<1x8x256xf32, #tpu.memory_space<vmem>>, vector<1x8x256xf32>
    %90 = vector.shape_cast %89 : vector<1x8x256xf32> to vector<8x256xf32>
    %91 = vector.shape_cast %88 : vector<8x256xf32> to vector<1x8x256xf32>
    tpu.vector_store %arg5[%c0_22, %c0_23, %c0_24], %91 {strides = array<i32>} : memref<1x8x256xf32, #tpu.memory_space<vmem>>, vector<1x8x256xf32>,
    return
  }
  func.func @transform_0(%arg0: i32, %arg1: i32) -> (i32, i32, i32) {
    %c0_i32 = arith.constant 0 : i32
    %c0_i32_0 = arith.constant 0 : i32
    return %arg0, %arg1, %c0_i32 : i32, i32, i32
  }
  func.func @transform_1(%arg0: i32, %arg1: i32) -> (i32, i32) {
    %c0_i32 = arith.constant 0 : i32
    %c0_i32_0 = arith.constant 0 : i32
    return %arg1, %c0_i32 : i32, i32
  }
  func.func @transform_2(%arg0: i32, %arg1: i32) -> (i32, i32) {
    %c0_i32 = arith.constant 0 : i32
    %c0_i32_0 = arith.constant 0 : i32
    return %arg1, %c0_i32 : i32, i32
  }
  func.func @transform_3(%arg0: i32, %arg1: i32) -> (i32, i32, i32) {
    %c0_i32 = arith.constant 0 : i32
    %c0_i32_0 = arith.constant 0 : i32
    return %arg0, %arg1, %c0_i32 : i32, i32, i32
  }
}

</mosaic_0001>

<llo_original>
// kernel: tpu_custom_call.1
$region0: #{tpu_custom_call.1}
  #allocation0 [shape = 'u32[]', space=smem, size = 0x4, offset = 0x4, fixed_abs, tag = 'smem constant byte address 0x4 - core index']
  #allocation1 [shape = 'u32[144,128]{1,0:T(1,128)}', space=vmem, size = 0x12000, scoped, tag = 'internal scratch']
  #allocation2 [shape = 'f32[8,512]{1,0:T(8,128)}', space=vmem, size = 0x4000, scoped, tag = 'scratch operand']
  %s0 = inlined_call_operand.hbm [shape: f32[2,8,256], index: 0, kind: input, shape index: {}]
  %s1 = inlined_call_operand.hbm [shape: f32[8,9], index: 1, kind: input, shape index: {}]
  %s2 = inlined_call_operand.hbm [shape: f32[8,1], index: 2, kind: input, shape index: {}]
  %s3 = inlined_call_operand.hbm [shape: f32[2,8,256], index: 3, kind: output, shape index: {}]
  %s4 = sld [smem:[#allocation0]]
  $region57: #{tpu_custom_call.1} parent=0
    _
  %s6 = ssub.s32 1, %s4
  %s7 = scalar_select 0, %s6, %s4
  $region1: #{tpu_custom_call.1} parent=0
    #allocation3 [shape = 'u8[16384]{0}', space=vmem, size = 0x4000, scoped, tag = 'input window, operand 0']
    #allocation4 [shape = 's32[2]{0}', space=sflag, size = 0x8, scoped, tag = 'scoped memory for tpu_custom_call.1']
    #allocation5 [shape = 's32[2]{0}', space=sflag, size = 0x8, scoped, tag = 'scoped memory for tpu_custom_call.1']
    #allocation6 [shape = 'u8[4096]{0}', space=vmem, size = 0x1000, scoped, tag = 'input window, operand 1, single buffered']
    #allocation7 [shape = 's32[1]{0}', space=sflag, size = 0x4, scoped, tag = 'scoped memory for tpu_custom_call.1']
    #allocation8 [shape = 'u8[4096]{0}', space=vmem, size = 0x1000, scoped, tag = 'input window, operand 2, single buffered']
    #allocation9 [shape = 'u8[16384]{0}', space=vmem, size = 0x4000, scoped, tag = 'output window, operand 0']
    %8 = vsyncpa [#allocation4], 0
    %s9 = scalar_lea.sflag [#allocation4], 1
    %10 = vsyncpa %s9, 0
    %11 = vsyncpa [#allocation7], 0
    %12 = vsyncpa [#allocation5], 0
    %s13 = scalar_lea.sflag [#allocation5], 1
    %14 = vsyncpa %s13, 0
    loop: start=0, step=1, limit=4
    $region2: #{tpu_custom_call.1} parent=1 // loop_pre_header
      _
    $region3: #{tpu_custom_call.1} parent=1 // loop_header
      %s16 = sphi 0, %s20
      %p17 = scmp.ge.s32.totalorder %s16, 4
      %s23 = sphi 0, %s35
      %s24 = sphi 0, %s31
      %s25 = sphi 0, %s23
      %s26 = sphi 0, %s24
      %s27 = sphi 0, %s25
      %s28 = sphi 0, %s26
      %s40 = sphi 0, %s42
      %s43 = sphi 0, %s40
      %s44 = sphi 0, %s43
      %s60 = sphi 0, %s44
      %s66 = sphi 0, %s68
      %s69 = sphi 0, %s66
      %s70 = sphi 0, %s69
      %s86 = sphi 0, %s70
      %s92 = sphi 0, %s94
      %s95 = sphi 0, %s92
      %s96 = sphi 0, %s95
      %s112 = sphi 0, %s96
      %s120 = sphi 0, %s122
      %s123 = sphi 0, %s120
      %s124 = sphi 0, %s123
      %s140 = sphi 0, %s124
    $region4: #{tpu_custom_call.1} parent=1 // loop_header_branch
      %19 = sbr.rel (%p17) target = $region8
    $region5: #{tpu_custom_call.1} parent=1 // loop_body
      %s21 = ssub.s32 %s16, 1
      %s22 = ssub.s32 %s16, 2
      %s29 = sadd.s32 1, %s24
      %p30 = scmp.ge.s32.totalorder %s29, 1
      %s31 = scalar_select %p30, 0, %s29
      %s32 = sadd.s32 1, %s23
      %s33 = scalar_select %p30, %s32, %s23
      %p34 = scmp.ge.s32.totalorder %s33, 2
      %s35 = scalar_select %p34, 0, %s33
      %s36 = ssub.s32 %s23, %s35
      %s37 = ssub.s32 %s24, %s31
      %s38 = sor.u32 %s36, %s37
      %p39 = scmp.eq.s32.totalorder %s38, 0
      %s41 = sadd.s32 %s40, 1
      %s42 = scalar_select %p39, %s40, %s41
      %p45 = pneg %p39
      %p46 = scmp.eq.s32.totalorder %s16, 1
      %p47 = por %p45, %p46
      %p48 = scmp.ne.s32.totalorder %s40, %s43
      %p49 = scmp.eq.s32.totalorder %s16, 0
      %p50 = por %p48, %p49
      %p51 = scmp.ne.s32.totalorder %s40, %s43
      %p52 = scmp.eq.s32.totalorder %s21, 1
      %p53 = por %p51, %p52
      %p54 = scmp.ne.s32.totalorder %s43, %s44
      %p55 = scmp.eq.s32.totalorder %s21, 0
      %p56 = por %p54, %p55
      %p57 = scmp.ne.s32.totalorder %s43, %s44
      %p58 = scmp.eq.s32.totalorder %s22, 1
      %p59 = por %p57, %p58
      %p61 = scmp.ne.s32.totalorder %s44, %s60
      %p62 = scmp.eq.s32.totalorder %s22, 0
      %p63 = por %p61, %p62
      %s64 = ssub.s32 %s24, %s31
      %p65 = scmp.eq.s32.totalorder %s64, 0
      %s67 = sadd.s32 %s66, 1
      %s68 = scalar_select %p65, %s66, %s67
      %p71 = pneg %p65
      %p72 = scmp.eq.s32.totalorder %s16, 1
      %p73 = por %p71, %p72
      %p74 = scmp.ne.s32.totalorder %s66, %s69
      %p75 = scmp.eq.s32.totalorder %s16, 0
      %p76 = por %p74, %p75
      %p77 = scmp.ne.s32.totalorder %s66, %s69
      %p78 = scmp.eq.s32.totalorder %s21, 1
      %p79 = por %p77, %p78
      %p80 = scmp.ne.s32.totalorder %s69, %s70
      %p81 = scmp.eq.s32.totalorder %s21, 0
      %p82 = por %p80, %p81
      %p83 = scmp.ne.s32.totalorder %s69, %s70
      %p84 = scmp.eq.s32.totalorder %s22, 1
      %p85 = por %p83, %p84
      %p87 = scmp.ne.s32.totalorder %s70, %s86
      %p88 = scmp.eq.s32.totalorder %s22, 0
      %p89 = por %p87, %p88
      %s90 = ssub.s32 %s24, %s31
      %p91 = scmp.eq.s32.totalorder %s90, 0
      %s93 = sadd.s32 %s92, 1
      %s94 = scalar_select %p91, %s92, %s93
      %p97 = pneg %p91
      %p98 = scmp.eq.s32.totalorder %s16, 1
      %p99 = por %p97, %p98
      %p100 = scmp.ne.s32.totalorder %s92, %s95
      %p101 = scmp.eq.s32.totalorder %s16, 0
      %p102 = por %p100, %p101
      %p103 = scmp.ne.s32.totalorder %s92, %s95
      %p104 = scmp.eq.s32.totalorder %s21, 1
      %p105 = por %p103, %p104
      %p106 = scmp.ne.s32.totalorder %s95, %s96
      %p107 = scmp.eq.s32.totalorder %s21, 0
      %p108 = por %p106, %p107
      %p109 = scmp.ne.s32.totalorder %s95, %s96
      %p110 = scmp.eq.s32.totalorder %s22, 1
      %p111 = por %p109, %p110
      %p113 = scmp.ne.s32.totalorder %s96, %s112
      %p114 = scmp.eq.s32.totalorder %s22, 0
      %p115 = por %p113, %p114
      %s116 = ssub.s32 %s23, %s35
      %s117 = ssub.s32 %s24, %s31
      %s118 = sor.u32 %s116, %s117
      %p119 = scmp.eq.s32.totalorder %s118, 0
      %s121 = sadd.s32 %s120, 1
      %s122 = scalar_select %p119, %s120, %s121
      %p125 = pneg %p119
      %p126 = scmp.eq.s32.totalorder %s16, 1
      %p127 = por %p125, %p126
      %p128 = scmp.ne.s32.totalorder %s120, %s123
      %p129 = scmp.eq.s32.totalorder %s16, 0
      %p130 = por %p128, %p129
      %p131 = scmp.ne.s32.totalorder %s120, %s123
      %p132 = scmp.eq.s32.totalorder %s21, 1
      %p133 = por %p131, %p132
      %p134 = scmp.ne.s32.totalorder %s123, %s124
      %p135 = scmp.eq.s32.totalorder %s21, 0
      %p136 = por %p134, %p135
      %p137 = scmp.ne.s32.totalorder %s123, %s124
      %p138 = scmp.eq.s32.totalorder %s22, 1
      %p139 = por %p137, %p138
      %p141 = scmp.ne.s32.totalorder %s124, %s140
      %p142 = scmp.eq.s32.totalorder %s22, 0
      %p143 = por %p141, %p142
      %p144 = scmp.le.s32.totalorder 1, %s16
      %p145 = scmp.lt.s32.totalorder %s16, 3
      %p146 = pnand %p144, %p145
      %p147 = pneg %p146
      // Predicated region
      $region9: #{tpu_custom_call.1} parent=5 // pred_check
        _
      $region10: #{tpu_custom_call.1} parent=5 // pred_check_branch
        %149 = sbr.rel (%p146) target = $region12
      $region11: #{tpu_custom_call.1} parent=5 // pred_region
        %s150 = ssub.s32 %s16, 1
        // Predicated region
        $region13: #{tpu_custom_call.1} parent=11 // pred_check
          %p151 = pneg %p82
        $region14: #{tpu_custom_call.1} parent=11 // pred_check_branch
          %153 = sbr.rel (%p151) target = $region16
        $region15: #{tpu_custom_call.1} parent=11 // pred_region
          %s155 = ssub.s32 128, 128
          %156 = vsyncadd [#allocation7], %s155
          %s157 = smul.addr %s26, 128
          %s158 = scalar_lea.hbm %s1, %s157
          %s160 = sshll.u32 [#allocation6], 4
          %s161 = int_to_ptr.vmem [resolvable:$true] %s160
          %163 = dma.hbm_to_vmem [thread:$0]  %s158, 128, %s161, [#allocation7]
        $region16: #{tpu_custom_call.1} parent=11 // pred_fallthru
          _
        // Predicated region
        $region17: #{tpu_custom_call.1} parent=11 // pred_check
          %p164 = pneg %p108
        $region18: #{tpu_custom_call.1} parent=11 // pred_check_branch
          %166 = sbr.rel (%p164) target = $region20
        $region19: #{tpu_custom_call.1} parent=11 // pred_region
          %s168 = ssub.s32 128, 128
          %169 = vsyncadd [#allocation7], %s168
          %s170 = smul.addr %s26, 128
          %s171 = scalar_lea.hbm %s2, %s170
          %s173 = sshll.u32 [#allocation8], 4
          %s174 = int_to_ptr.vmem [resolvable:$true] %s173
          %176 = dma.hbm_to_vmem [thread:$0]  %s171, 128, %s174, [#allocation7]
        $region20: #{tpu_custom_call.1} parent=11 // pred_fallthru
          _
      $region12: #{tpu_custom_call.1} parent=5 // pred_fallthru
        _
      %p177 = scmp.lt.s32.totalorder %s16, 2
      // Predicated region
      $region21: #{tpu_custom_call.1} parent=5 // pred_check
        %p178 = pneg %p177
      $region22: #{tpu_custom_call.1} parent=5 // pred_check_branch
        %180 = sbr.rel (%p178) target = $region24
      $region23: #{tpu_custom_call.1} parent=5 // pred_region
        // Predicated region
        $region25: #{tpu_custom_call.1} parent=23 // pred_check
          %p181 = pneg %p50
        $region26: #{tpu_custom_call.1} parent=23 // pred_check_branch
          %183 = sbr.rel (%p181) target = $region28
        $region27: #{tpu_custom_call.1} parent=23 // pred_region
          %s184 = sand.u32 %s40, 1
          %s185 = scalar_lea.sflag [#allocation4], %s184
          %s186 = sand.u32 %s40, 1
          %s187 = smul.addr %s186, 16
          %s188 = scalar_lea.vmem [#allocation3], %s187
          %s190 = ssub.s32 256, 256
          %191 = vsyncadd %s185, %s190
          %s192 = smul.addr %s24, 2
          %s193 = smul.addr %s23, 2
          %s194 = sadd.s32 %s192, %s193
          %s195 = smul.addr %s194, 128
          %s196 = scalar_lea.hbm %s0, %s195
          %s198 = sshll.u32 %s188, 4
          %s199 = int_to_ptr.vmem [resolvable:$true] %s198
          %201 = dma.hbm_to_vmem [thread:$0]  %s196, 256, %s199, %s185
        $region28: #{tpu_custom_call.1} parent=23 // pred_fallthru
          _
      $region24: #{tpu_custom_call.1} parent=5 // pred_fallthru
        _
      %p202 = scmp.le.s32.totalorder 1, %s16
      %p203 = scmp.lt.s32.totalorder %s16, 3
      %p204 = pnand %p202, %p203
      %p205 = pneg %p204
      // Predicated region
      $region29: #{tpu_custom_call.1} parent=5 // pred_check
        _
      $region30: #{tpu_custom_call.1} parent=5 // pred_check_branch
        %207 = sbr.rel (%p204) target = $region32
      $region31: #{tpu_custom_call.1} parent=5 // pred_region
        %s208 = ssub.s32 %s16, 1
        %s209 = sand.u32 %s43, 1
        %s210 = scalar_lea.sflag [#allocation4], %s209
        %s211 = sand.u32 %s43, 1
        %s212 = smul.addr %s211, 16
        %s213 = scalar_lea.vmem [#allocation3], %s212
        // Predicated region
        $region33: #{tpu_custom_call.1} parent=31 // pred_check
          %p214 = pneg %p56
        $region34: #{tpu_custom_call.1} parent=31 // pred_check_branch
          %216 = sbr.rel (%p214) target = $region36
        $region35: #{tpu_custom_call.1} parent=31 // pred_region
          %217 = dma.done %s210, 256
        $region36: #{tpu_custom_call.1} parent=31 // pred_fallthru
          _
        // Predicated region
        $region37: #{tpu_custom_call.1} parent=31 // pred_check
          %p218 = pneg %p82
        $region38: #{tpu_custom_call.1} parent=31 // pred_check_branch
          %220 = sbr.rel (%p218) target = $region40
        $region39: #{tpu_custom_call.1} parent=31 // pred_region
          %221 = dma.done [#allocation7], 128
        $region40: #{tpu_custom_call.1} parent=31 // pred_fallthru
          _
        // Predicated region
        $region41: #{tpu_custom_call.1} parent=31 // pred_check
          %p222 = pneg %p108
        $region42: #{tpu_custom_call.1} parent=31 // pred_check_branch
          %224 = sbr.rel (%p222) target = $region44
        $region43: #{tpu_custom_call.1} parent=31 // pred_region
          %225 = dma.done [#allocation7], 128
        $region44: #{tpu_custom_call.1} parent=31 // pred_fallthru
          _
        %s226 = sand.u32 %s43, 1
        %s227 = scalar_lea.sflag [#allocation4], %s226
        %s228 = sand.u32 %s43, 1
        %s229 = smul.addr %s228, 16
        %s230 = scalar_lea.vmem [#allocation3], %s229
        %p231 = pneg %p56
        %p232 = pneg %p53
        %p233 = pneg %p82
        %p234 = pneg %p79
        %p235 = pneg %p108
        %p236 = pneg %p105
        %p237 = pneg %p136
        %p238 = pneg %p133
        %s239 = sand.u32 %s123, 1
        %s240 = scalar_lea.sflag [#allocation5], %s239
        %s241 = sand.u32 %s123, 1
        %s242 = smul.addr %s241, 16
        %s243 = scalar_lea.vmem [#allocation9], %s242
        %244 = vst [vmem:[#allocation2] sm:$0xff] 0.0
        %245 = vst [vmem:[#allocation2 + $0x8] sm:$0xff] 0.0
        %246 = vst [vmem:[#allocation2 + $0x10] sm:$0xff] 0.0
        %247 = vst [vmem:[#allocation2 + $0x18] sm:$0xff] 0.0
        %v248 = vld [vmem:[%s213] sm:$0xff]
        %v249 = vld [vmem:[%s213 + $0x8] sm:$0xff]
        %250 = vst [vmem:[#allocation2 + $0x8] sm:$0xff] %v248
        %251 = vst [vmem:[#allocation2 + $0x10] sm:$0xff] %v249
        %v252 = vld [vmem:[#allocation2] sm:$0xff]
        %v253 = vld [vmem:[#allocation2 + $0x8] sm:$0xff]
        %v254 = vld [vmem:[#allocation2 + $0x10] sm:$0xff]
        %v255 = vld [vmem:[#allocation2 + $0x18] sm:$0xff]
        %v256 = vld [vmem:[#allocation6] sm:$0xff]
        %v257 = vld [vmem:[#allocation8] sm:$0xff]
        %v258 = vlaneseq
        %v259 = vand.u32 %v258, 127
        %v260 = vadd.s32 %v259, 128
        %vm261 = vcmp.lt.s32.totalorder %v259, 0
        %v262 = vsub.s32 0, %v259
        %v263 = vsel %vm261, %v262, %v259
        %v264 = vshrl.u32 %v263, 4
        %v265 = vand.u32 %v263, 15
        %v266 = vsub.s32 0, %v265
        %v267 = vsel %vm261, %v266, %v265
        %vm268 = vcmp.lt.s32.totalorder %v260, 0
        %v269 = vsub.s32 0, %v260
        %v270 = vsel %vm268, %v269, %v260
        %v271 = vshrl.u32 %v270, 4
        %v272 = vand.u32 %v270, 15
        %v273 = vsub.s32 0, %v272
        %v274 = vsel %vm268, %v273, %v272
        %vm275 = vcmp.ne.s32.totalorder %v267, 0
        %vm276 = vcmp.ne.s32.totalorder %v274, 0
        %vm277 = vcmp.lt.s32.totalorder %v267, 0
        %vm278 = vcmp.lt.s32.totalorder %v274, 0
        %vm279 = vmand %vm277, %vm275
        %vm280 = vmand %vm278, %vm276
        %v281 = vadd.s32 %v267, 16
        %v282 = vadd.s32 %v274, 16
        %v283 = vsel %vm279, %v281, %v267
        %v284 = vsel %vm280, %v282, %v274
        %vm285 = vcmp.ne.s32.totalorder %v283, 0
        %vm286 = vcmp.ne.s32.totalorder %v284, 0
        %vm287 = vcmp.ne.s32.totalorder %v283, 15
        %vm288 = vcmp.ne.s32.totalorder %v284, 15
        %292 = vrot.lane.b32.xlu0 %v252, 17
        %v293 = vpop.permute.xlu0 %292
        %294 = vrot.lane.b32.xlu0 %v253, 17
        %v295 = vpop.permute.xlu0 %294
        %296 = vrot.lane.b32.xlu0 %v254, 17
        %v297 = vpop.permute.xlu0 %296
        %vm298 = vcmask 138240
        %v299 = vsel %vm298, %v293, %v295
        %v300 = vsel %vm298, %v295, %v297
        %v303 = vsel %vm285, %v299, 0.0
        %v304 = vsel %vm286, %v300, 0.0
        %306 = vset.pattern.permute.xlu0 0
        %307 = vperm.xlu0 %306, %v256
        %v308 = vpop.permute.xlu0 %307
        %v310 = vmul.f32 %v303, %v308
        %v311 = vmul.f32 %v304, %v308
        %v312 = vadd.f32 %v310, 0.0
        %v313 = vadd.f32 %v311, 0.0
        %314 = vset.pattern.permute.xlu0 1
        %315 = vperm.xlu0 %314, %v256
        %v316 = vpop.permute.xlu0 %315
        %v318 = vmul.f32 %v252, %v316
        %v319 = vmul.f32 %v253, %v316
        %v320 = vmul.f32 %v254, %v316
        %324 = vrot.lane.b32.xlu0 %v318, 16
        %v325 = vpop.permute.xlu0 %324
        %326 = vrot.lane.b32.xlu0 %v319, 16
        %v327 = vpop.permute.xlu0 %326
        %328 = vrot.lane.b32.xlu0 %v320, 16
        %v329 = vpop.permute.xlu0 %328
        %vm330 = vcmask 130048
        %v331 = vsel %vm330, %v325, %v327
        %v332 = vsel %vm330, %v327, %v329
        %v335 = vadd.f32 %v312, %v331
        %v336 = vadd.f32 %v313, %v332
        %337 = vrot.lane.b32.xlu0 %v252, 15
        %v338 = vpop.permute.xlu0 %337
        %339 = vrot.lane.b32.xlu0 %v253, 15
        %v340 = vpop.permute.xlu0 %339
        %341 = vrot.lane.b32.xlu0 %v254, 15
        %v342 = vpop.permute.xlu0 %341
        %vm343 = vcmask 121856
        %v344 = vsel %vm343, %v338, %v340
        %v345 = vsel %vm343, %v340, %v342
        %v348 = vsel %vm287, %v344, 0.0
        %v349 = vsel %vm288, %v345, 0.0
        %350 = vset.pattern.permute.xlu0 2
        %351 = vperm.xlu0 %350, %v256
        %v352 = vpop.permute.xlu0 %351
        %v354 = vmul.f32 %v348, %v352
        %v355 = vmul.f32 %v349, %v352
        %v356 = vadd.f32 %v335, %v354
        %v357 = vadd.f32 %v336, %v355
        %358 = vrot.lane.b32.xlu0 %v252, 1
        %v359 = vpop.permute.xlu0 %358
        %360 = vrot.lane.b32.xlu0 %v253, 1
        %v361 = vpop.permute.xlu0 %360
        %362 = vrot.lane.b32.xlu0 %v254, 1
        %v363 = vpop.permute.xlu0 %362
        %vm364 = vcmask 7168
        %v365 = vsel %vm364, %v359, %v361
        %v366 = vsel %vm364, %v361, %v363
        %v369 = vsel %vm285, %v365, 0.0
        %v370 = vsel %vm286, %v366, 0.0
        %371 = vset.pattern.permute.xlu0 3
        %372 = vperm.xlu0 %371, %v256
        %v373 = vpop.permute.xlu0 %372
        %v375 = vmul.f32 %v369, %v373
        %v376 = vmul.f32 %v370, %v373
        %v377 = vadd.f32 %v356, %v375
        %v378 = vadd.f32 %v357, %v376
        %379 = vset.pattern.permute.xlu0 4
        %380 = vperm.xlu0 %379, %v256
        %v381 = vpop.permute.xlu0 %380
        %v383 = vmul.f32 %v253, %v381
        %v384 = vmul.f32 %v254, %v381
        %v385 = vadd.f32 %v377, %v383
        %v386 = vadd.f32 %v378, %v384
        %388 = vrot.lane.b32.xlu0 %v253, 127
        %v389 = vpop.permute.xlu0 %388
        %390 = vrot.lane.b32.xlu0 %v254, 127
        %v391 = vpop.permute.xlu0 %390
        %392 = vrot.lane.b32.xlu0 %v255, 127
        %v393 = vpop.permute.xlu0 %392
        %vm394 = vcmask 1039360
        %v395 = vsel %vm394, %v389, %v391
        %v396 = vsel %vm394, %v391, %v393
        %v399 = vsel %vm287, %v395, 0.0
        %v400 = vsel %vm288, %v396, 0.0
        %401 = vset.pattern.permute.xlu0 5
        %402 = vperm.xlu0 %401, %v256
        %v403 = vpop.permute.xlu0 %402
        %v405 = vmul.f32 %v399, %v403
        %v406 = vmul.f32 %v400, %v403
        %v407 = vadd.f32 %v385, %v405
        %v408 = vadd.f32 %v386, %v406
        %409 = vrot.lane.b32.xlu0 %v253, 113
        %v410 = vpop.permute.xlu0 %409
        %411 = vrot.lane.b32.xlu0 %v254, 113
        %v412 = vpop.permute.xlu0 %411
        %413 = vrot.lane.b32.xlu0 %v255, 113
        %v414 = vpop.permute.xlu0 %413
        %vm415 = vcmask 924672
        %v416 = vsel %vm415, %v410, %v412
        %v417 = vsel %vm415, %v412, %v414
        %v420 = vsel %vm285, %v416, 0.0
        %v421 = vsel %vm286, %v417, 0.0
        %422 = vset.pattern.permute.xlu0 6
        %423 = vperm.xlu0 %422, %v256
        %v424 = vpop.permute.xlu0 %423
        %v426 = vmul.f32 %v420, %v424
        %v427 = vmul.f32 %v421, %v424
        %v428 = vadd.f32 %v407, %v426
        %v429 = vadd.f32 %v408, %v427
        %430 = vset.pattern.permute.xlu0 7
        %431 = vperm.xlu0 %430, %v256
        %v432 = vpop.permute.xlu0 %431
        %v434 = vmul.f32 %v253, %v432
        %v435 = vmul.f32 %v254, %v432
        %v436 = vmul.f32 %v255, %v432
        %440 = vrot.lane.b32.xlu0 %v434, 112
        %v441 = vpop.permute.xlu0 %440
        %442 = vrot.lane.b32.xlu0 %v435, 112
        %v443 = vpop.permute.xlu0 %442
        %444 = vrot.lane.b32.xlu0 %v436, 112
        %v445 = vpop.permute.xlu0 %444
        %vm446 = vcmask 916480
        %v447 = vsel %vm446, %v441, %v443
        %v448 = vsel %vm446, %v443, %v445
        %v451 = vadd.f32 %v428, %v447
        %v452 = vadd.f32 %v429, %v448
        %453 = vrot.lane.b32.xlu0 %v253, 111
        %v454 = vpop.permute.xlu0 %453
        %455 = vrot.lane.b32.xlu0 %v254, 111
        %v456 = vpop.permute.xlu0 %455
        %457 = vrot.lane.b32.xlu0 %v255, 111
        %v458 = vpop.permute.xlu0 %457
        %vm459 = vcmask 908288
        %v460 = vsel %vm459, %v454, %v456
        %v461 = vsel %vm459, %v456, %v458
        %v464 = vsel %vm287, %v460, 0.0
        %v465 = vsel %vm288, %v461, 0.0
        %466 = vset.pattern.permute.xlu0 8
        %467 = vperm.xlu0 %466, %v256
        %v468 = vpop.permute.xlu0 %467
        %v470 = vmul.f32 %v464, %v468
        %v471 = vmul.f32 %v465, %v468
        %v472 = vadd.f32 %v451, %v470
        %v473 = vadd.f32 %v452, %v471
        %475 = vset.pattern.permute.xlu0 0
        %476 = vperm.xlu0 %475, %v257
        %v477 = vpop.permute.xlu0 %476
        %v479 = vadd.f32 %v472, %v477
        %v480 = vadd.f32 %v473, %v477
        %481 = vst [vmem:[%s243] sm:$0xff] %v479
        %482 = vst [vmem:[%s243 + $0x8] sm:$0xff] %v480
        %s483 = sand.u32 %s123, 1
        %s484 = scalar_lea.sflag [#allocation5], %s483
        %s485 = sand.u32 %s123, 1
        %s486 = smul.addr %s485, 16
        %s487 = scalar_lea.vmem [#allocation9], %s486
        // Predicated region
        $region45: #{tpu_custom_call.1} parent=31 // pred_check
          %p488 = pneg %p133
        $region46: #{tpu_custom_call.1} parent=31 // pred_check_branch
          %490 = sbr.rel (%p488) target = $region48
        $region47: #{tpu_custom_call.1} parent=31 // pred_region
          %s492 = ssub.s32 256, 256
          %493 = vsyncadd %s484, %s492
          %s494 = smul.addr %s26, 2
          %s495 = smul.addr %s25, 2
          %s496 = sadd.s32 %s494, %s495
          %s497 = smul.addr %s496, 128
          %s498 = scalar_lea.hbm %s3, %s497
          %s500 = sshll.u32 %s487, 4
          %s501 = int_to_ptr.vmem [resolvable:$true] %s500
          %503 = dma.vmem_to_hbm [thread:$0]  %s501, 256, %s498, %s484
        $region48: #{tpu_custom_call.1} parent=31 // pred_fallthru
          _
      $region32: #{tpu_custom_call.1} parent=5 // pred_fallthru
        _
      %p504 = scmp.le.s32.totalorder 2, %s16
      // Predicated region
      $region49: #{tpu_custom_call.1} parent=5 // pred_check
        %p505 = pneg %p504
      $region50: #{tpu_custom_call.1} parent=5 // pred_check_branch
        %507 = sbr.rel (%p505) target = $region52
      $region51: #{tpu_custom_call.1} parent=5 // pred_region
        %s508 = ssub.s32 %s16, 2
        // Predicated region
        $region53: #{tpu_custom_call.1} parent=51 // pred_check
          %p509 = pneg %p139
        $region54: #{tpu_custom_call.1} parent=51 // pred_check_branch
          %511 = sbr.rel (%p509) target = $region56
        $region55: #{tpu_custom_call.1} parent=51 // pred_region
          %s512 = sand.u32 %s124, 1
          %s513 = scalar_lea.sflag [#allocation5], %s512
          %s514 = sand.u32 %s124, 1
          %s515 = smul.addr %s514, 16
          %s516 = scalar_lea.vmem [#allocation9], %s515
          %517 = dma.done %s513, 256
        $region56: #{tpu_custom_call.1} parent=51 // pred_fallthru
          _
      $region52: #{tpu_custom_call.1} parent=5 // pred_fallthru
        _
    $region6: #{tpu_custom_call.1} parent=1 // loop_footer
      %s20 = sadd.s32 1, %s16
    $region7: #{tpu_custom_call.1} parent=1 // loop_footer_branch
      %15 = sbr.rel target = $region3
    $region8: #{tpu_custom_call.1} parent=1 // loop_exit
      _
    %518 = vsyncpa [#allocation4], 1
    %s519 = scalar_lea.sflag [#allocation4], 1
    %520 = vsyncpa %s519, 1
    %521 = vsyncpa [#allocation7], 1
    %522 = vsyncpa [#allocation5], 1
    %s523 = scalar_lea.sflag [#allocation5], 1
    %524 = vsyncpa %s523, 1

</llo_original>
